<compile_context>
chip_gen: v5e
topology: v5e:2x2
jax: 0.10.0
libtpu: 0.0.40
codegen_flags: <defaults>
</compile_context>

<pallas_src>
import jax
import jax.numpy as jnp
from jax.experimental import pallas as pl
from jax.experimental.pallas import tpu as pltpu


def _round_up(x, m):
    return (x + m - 1) // m * m


def _pick_divisor_tile(total, target, step=128):
    """Largest multiple of `step` that divides `total` and is <= target."""
    t = max(step, (min(target, total) // step) * step)
    while total % t:
        t -= step
    return t


def _vmem_limit(need_bytes):
    try:
        cap = pltpu.get_tpu_info().vmem_capacity_bytes
    except Exception:
        cap = 64 << 20  # conservative: v7x per-TensorCore VMEM
    headroom = 12 << 20
    return int(min(max(2 * need_bytes, 8 << 20), cap - headroom))


# --------------------------------------------------------------------------
# Kernel 1: stand-in encode_image — K-tiled bf16 matmul, f32 accumulation.
# --------------------------------------------------------------------------
def encoder_kernel(x_ref, we_ref, be_ref, feat_ref, acc_ref):
    k = pl.program_id(2)

    @pl.when(k == 0)
    def _init():
        acc_ref[...] = jnp.zeros_like(acc_ref)

    acc_ref[...] += jnp.dot(x_ref[...], we_ref[...],
                            preferred_element_type=jnp.float32)

    @pl.when(k == pl.num_programs(2) - 1)
    def _finalize():
        # image_features.float(): keep features in f32.
        feat_ref[...] = (acc_ref[...] + be_ref[...]).astype(feat_ref.dtype)


# --------------------------------------------------------------------------
# Kernel 2: classifier head (Dropout -> Linear -> ReLU -> Dropout -> Linear).
# Dropout is identity at inference.
# --------------------------------------------------------------------------
def head_kernel(feat_ref, w1_ref, b1_ref, w2_ref, b2_ref, out_ref):
    h = jnp.dot(feat_ref[...], w1_ref[...],
                preferred_element_type=jnp.float32) + b1_ref[...]
    h = jnp.maximum(h, 0.0)                                   # ReLU
    logits = jnp.dot(h, w2_ref[...],
                     preferred_element_type=jnp.float32) + b2_ref[...]
    out_ref[...] = logits.astype(out_ref.dtype)


# --------------------------------------------------------------------------
# One-time parameter preparation (pad + cast, hoisted out of the hot path).
# Weights are stored pre-transposed [in_features, out_features] so the kernels
# compute x @ W + b (== PyTorch's x @ W_pt.T + b).
# --------------------------------------------------------------------------
def prepare_params(params, in_dim):
    we, be, w1, b1, w2, b2 = (params["we"], params["be"], params["w1"],
                              params["b1"], params["w2"], params["b2"])
    embed_dim = we.shape[1]
    hidden = w1.shape[1]
    num_classes = w2.shape[1]

    k_pad = _round_up(in_dim, 128)
    e_pad = _round_up(embed_dim, 128)
    h_pad = _round_up(hidden, 128)
    n_pad = _round_up(num_classes, 128)

    we_p = jnp.zeros((k_pad, e_pad), jnp.bfloat16
                     ).at[:in_dim, :embed_dim].set(we.astype(jnp.bfloat16))
    be_p = jnp.zeros((1, e_pad), jnp.float32).at[:, :embed_dim].set(be)
    w1_p = jnp.zeros((e_pad, h_pad), jnp.float32
                     ).at[:embed_dim, :hidden].set(w1)
    b1_p = jnp.zeros((1, h_pad), jnp.float32).at[:, :hidden].set(b1)
    w2_p = jnp.zeros((h_pad, n_pad), jnp.float32
                     ).at[:hidden, :num_classes].set(w2)
    b2_p = jnp.zeros((1, n_pad), jnp.float32).at[:, :num_classes].set(b2)

    dims = dict(in_dim=in_dim, embed_dim=embed_dim, hidden=hidden,
                num_classes=num_classes, k_pad=k_pad, e_pad=e_pad,
                h_pad=h_pad, n_pad=n_pad)
    return dict(we=we_p, be=be_p, w1=w1_p, b1=b1_p, w2=w2_p, b2=b2_p,
                dims=dims)


def clip_classifier_forward(images_nchw, prepared, *, tk_target=2048,
                            tm_target=512):
    """images_nchw: [B, 3, H, W] float32.  Returns logits [B, num_classes]."""
    d = prepared["dims"]
    in_dim, k_pad = d["in_dim"], d["k_pad"]
    e_pad, h_pad, n_pad = d["e_pad"], d["h_pad"], d["n_pad"]
    num_classes = d["num_classes"]

    B = images_nchw.shape[0]
    x = images_nchw.reshape(B, -1)                  # glue: NCHW -> [B, 3*H*W]
    assert x.shape[1] == in_dim

    # ---- tile geometry ----
    m_base = _round_up(B, 16)                       # bf16 packed sublane tile
    tm = min(m_base, tm_target)
    m_pad = _round_up(m_base, tm)
    tk = _pick_divisor_tile(k_pad, tk_target)       # divides k_pad, no zero K
    # Split embed into 256-wide columns when possible (2nd TC work on v7x).
    if e_pad <= 256:
        te = e_pad
    elif e_pad % 256 == 0:
        te = 256
    else:
        te = 128

    # ---- per-call activation padding (bf16 streamed operand) ----
    x_p = jnp.zeros((m_pad, k_pad), jnp.bfloat16
                    ).at[:B, :in_dim].set(x.astype(jnp.bfloat16))

    we_p, be_p = prepared["we"], prepared["be"]
    w1_p, b1_p = prepared["w1"], prepared["b1"]
    w2_p, b2_p = prepared["w2"], prepared["b2"]

    n_m, n_e, n_k = m_pad // tm, e_pad // te, k_pad // tk

    # ------------------------------------------------------------------
    # Kernel 1: features = x @ we + be          [m_pad, e_pad] f32
    # ------------------------------------------------------------------
    enc_vmem_need = (2 * (tm * tk + tk * te) * 2      # double-buffered bf16 streams
                     + tm * te * 4                    # f32 accumulator
                     + 2 * tm * te * 4                # double-buffered f32 out
                     + 2 * te * 4)                    # bias
    enc_flops = 2 * m_pad * k_pad * e_pad
    enc_bytes = int(n_m * we_p.size * 2               # we once per M tile
                    + n_e * x_p.size * 2              # x once per E tile
                    + be_p.size * 4
                    + m_pad * e_pad * 4)              # feature writeback

    features = pl.pallas_call(
        encoder_kernel,
        out_shape=jax.ShapeDtypeStruct((m_pad, e_pad), jnp.float32),
        grid_spec=pltpu.PrefetchScalarGridSpec(
            num_scalar_prefetch=0,
            grid=(n_m, n_e, n_k),
            in_specs=[
                pl.BlockSpec((tm, tk), lambda i, j, k: (i, k)),   # x  (streamed)
                pl.BlockSpec((tk, te), lambda i, j, k: (k, j)),   # we (streamed)
                pl.BlockSpec((1, te), lambda i, j, k: (0, j)),    # be (resident)
            ],
            out_specs=pl.BlockSpec((tm, te), lambda i, j, k: (i, j)),
            scratch_shapes=[pltpu.VMEM((tm, te), jnp.float32)],
        ),
        compiler_params=pltpu.CompilerParams(
            dimension_semantics=("parallel", "parallel", "arbitrary"),
            vmem_limit_bytes=_vmem_limit(enc_vmem_need)),
        cost_estimate=pl.CostEstimate(flops=enc_flops, transcendentals=0,
                                      bytes_accessed=enc_bytes),
    )(x_p, we_p, be_p)

    # ------------------------------------------------------------------
    # Kernel 2: logits = ReLU(features @ w1 + b1) @ w2 + b2
    # ------------------------------------------------------------------
    head_vmem_need = (2 * tm * e_pad * 4
                      + (e_pad * h_pad + h_pad + h_pad * n_pad + n_pad) * 4
                      + 2 * tm * n_pad * 4
                      + tm * h_pad * 4)
    head_flops = 2 * m_pad * (e_pad * h_pad + h_pad * n_pad)
    head_bytes = int(m_pad * e_pad * 4
                     + (w1_p.size + b1_p.size + w2_p.size + b2_p.size) * 4
                     + m_pad * n_pad * 4)

    out = pl.pallas_call(
        head_kernel,
        out_shape=jax.ShapeDtypeStruct((m_pad, n_pad), jnp.float32),
        grid_spec=pltpu.PrefetchScalarGridSpec(
            num_scalar_prefetch=0,
            grid=(n_m,),
            in_specs=[
                pl.BlockSpec((tm, e_pad), lambda i: (i, 0)),       # features
                pl.BlockSpec((e_pad, h_pad), lambda i: (0, 0)),    # w1 (resident)
                pl.BlockSpec((1, h_pad), lambda i: (0, 0)),        # b1 (resident)
                pl.BlockSpec((h_pad, n_pad), lambda i: (0, 0)),    # w2 (resident)
                pl.BlockSpec((1, n_pad), lambda i: (0, 0)),        # b2 (resident)
            ],
            out_specs=pl.BlockSpec((tm, n_pad), lambda i: (i, 0)),
        ),
        compiler_params=pltpu.CompilerParams(
            dimension_semantics=("parallel",),
            vmem_limit_bytes=_vmem_limit(head_vmem_need)),
        cost_estimate=pl.CostEstimate(flops=head_flops, transcendentals=0,
                                      bytes_accessed=head_bytes),
    )(features, w1_p, b1_p, w2_p, b2_p)

    return out[:B, :num_classes]


def init_params(key, in_dim, embed_dim, num_classes):
    """Deterministic synthetic parameters (PyTorch Linear-style uniform init)."""
    hidden = embed_dim // 2
    ks = jax.random.split(key, 6)

    def lin(kw, kb, fan_in, fan_out):
        bound = 1.0 / jnp.sqrt(fan_in)
        w = jax.random.uniform(kw, (fan_in, fan_out), jnp.float32, -bound, bound)
        b = jax.random.uniform(kb, (1, fan_out), jnp.float32, -bound, bound)
        return w, b

    we, be = lin(ks[0], ks[1], in_dim, embed_dim)       # encode_image stand-in
    w1, b1 = lin(ks[2], ks[3], embed_dim, hidden)       # Linear(embed, embed//2)
    w2, b2 = lin(ks[4], ks[5], hidden, num_classes)     # Linear(embed//2, classes)
    return dict(we=we, be=be, w1=w1, b1=b1, w2=w2, b2=b2)


if __name__ == "__main__":
    key = jax.random.PRNGKey(0)
    k_img, k_par = jax.random.split(key)

    # Small shapes consistent with the module: batch=2, 3-channel 16x16 images,
    # embed_dim=32 (-> hidden 16), num_classes=8.  in_dim = 768.
    B, C, H, W = 2, 3, 16, 16
    embed_dim, num_classes = 32, 8
    in_dim = C * H * W

    images = jax.random.normal(k_img, (B, C, H, W), jnp.float32)   # NCHW
    params = init_params(k_par, in_dim, embed_dim, num_classes)
    prepared = prepare_params(params, in_dim)          # pad/cast once, off hot path

    logits = clip_classifier_forward(images, prepared)
    jax.block_until_ready(logits)
    assert logits.shape == (B, num_classes)

    # Pure-JAX reference of the same math (bf16-cast streamed operands, f32 head).
    x_flat = images.reshape(B, -1)
    xb = x_flat.astype(jnp.bfloat16).astype(jnp.float32)
    web = params["we"].astype(jnp.bfloat16).astype(jnp.float32)
    hp = jax.lax.Precision.HIGHEST
    feat = jnp.dot(xb, web, precision=hp) + params["be"]
    h = jnp.maximum(jnp.dot(feat, params["w1"], precision=hp) + params["b1"], 0.0)
    ref = jnp.dot(h, params["w2"], precision=hp) + params["b2"]

    assert jnp.allclose(logits, ref, atol=1e-2, rtol=1e-2), (
        jnp.max(jnp.abs(logits - ref)))

    print("KERNEL_OK")
</pallas_src>

<mosaic_0001>
module attributes {stable_mosaic.version = 11 : i64} {
  func.func @encoder_kernel(%arg0: i32, %arg1: i32, %arg2: i32, %arg3: memref<16x768xbf16, #tpu.memory_space<vmem>>, %arg4: memref<768x128xbf16, #tpu.memory_space<vmem>>, %arg5: memref<1x128xf32, #tpu.memory_space<vmem>>, %arg6: memref<16x128xf32, #tpu.memory_space<vmem>>, %arg7: memref<16x128xf32, #tpu.memory_space<vmem>>) attributes {dimension_semantics = [#tpu.dimension_semantics<parallel>, #tpu.dimension_semantics<parallel>, #tpu.dimension_semantics<arbitrary>], iteration_bounds = array<i64: 1, 1, 1>, scalar_prefetch = 0 : i64, scratch_operands = 1 : i64, tpu.core_type = #tpu.core_type<tc>, window_params = [{transform_indices = @transform_0, window_bounds = array<i64: 16, 768>}, {transform_indices = @transform_1, window_bounds = array<i64: 768, 128>}, {transform_indices = @transform_2, window_bounds = array<i64: 1, 128>}, {transform_indices = @transform_3, window_bounds = array<i64: 16, 128>}]} {
    %c0_i32 = arith.constant 0 : i32
    %0 = arith.cmpi eq, %arg2, %c0_i32 : i32
    %1 = arith.extui %0 : i1 to i32
    %c0_i32_0 = arith.constant 0 : i32
    %2 = arith.cmpi ne, %1, %c0_i32_0 : i32
    scf.if %2 {
      %cst_10 = arith.constant 0.000000e+00 : f32
      %12 = vector.broadcast %cst_10 : f32 to vector<16x128xf32>
      %c0_11 = arith.constant 0 : index
      %c0_12 = arith.constant 0 : index
      %13 = vector.load %arg7[%c0_11, %c0_12] : memref<16x128xf32, #tpu.memory_space<vmem>>, vector<16x128xf32>
      tpu.vector_store %arg7[%c0_11, %c0_12], %12 {strides = array<i32>} : memref<16x128xf32, #tpu.memory_space<vmem>>, vector<16x128xf32>,
    } else {
    }
    %c0 = arith.constant 0 : index
    %c0_1 = arith.constant 0 : index
    %3 = vector.load %arg7[%c0, %c0_1] : memref<16x128xf32, #tpu.memory_space<vmem>>, vector<16x128xf32>
    %c0_2 = arith.constant 0 : index
    %c0_3 = arith.constant 0 : index
    %4 = vector.load %arg3[%c0_2, %c0_3] : memref<16x768xbf16, #tpu.memory_space<vmem>>, vector<16x768xbf16>
    %c0_4 = arith.constant 0 : index
    %c0_5 = arith.constant 0 : index
    %5 = vector.load %arg4[%c0_4, %c0_5] : memref<768x128xbf16, #tpu.memory_space<vmem>>, vector<768x128xbf16>
    %cst = arith.constant dense<0.000000e+00> : vector<16x128xf32>
    %6 = tpu.matmul %4, %5, %cst {dimension_numbers = #tpu.dot_dimension_numbers<[1], [0], [0], [1], [0, 0, 1, 1], [], []>} : vector<16x768xbf16>, vector<768x128xbf16>, vector<16x128xf32> -> vector<16x128xf32>
    %7 = arith.addf %3, %6 : vector<16x128xf32>
    %c0_6 = arith.constant 0 : index
    %c0_7 = arith.constant 0 : index
    %8 = vector.load %arg7[%c0_6, %c0_7] : memref<16x128xf32, #tpu.memory_space<vmem>>, vector<16x128xf32>
    tpu.vector_store %arg7[%c0_6, %c0_7], %7 {strides = array<i32>} : memref<16x128xf32, #tpu.memory_space<vmem>>, vector<16x128xf32>,
    %c0_i32_8 = arith.constant 0 : i32
    %9 = arith.cmpi eq, %arg2, %c0_i32_8 : i32
    %10 = arith.extui %9 : i1 to i32
    %c0_i32_9 = arith.constant 0 : i32
    %11 = arith.cmpi ne, %10, %c0_i32_9 : i32
    scf.if %11 {
      %c0_10 = arith.constant 0 : index
      %c0_11 = arith.constant 0 : index
      %12 = vector.load %arg7[%c0_10, %c0_11] : memref<16x128xf32, #tpu.memory_space<vmem>>, vector<16x128xf32>
      %c0_12 = arith.constant 0 : index
      %c0_13 = arith.constant 0 : index
      %13 = vector.load %arg5[%c0_12, %c0_13] : memref<1x128xf32, #tpu.memory_space<vmem>>, vector<1x128xf32>
      %14 = vector.broadcast %13 : vector<1x128xf32> to vector<16x128xf32>
      %15 = arith.addf %12, %14 : vector<16x128xf32>
      %c0_14 = arith.constant 0 : index
      %c0_15 = arith.constant 0 : index
      %16 = vector.load %arg6[%c0_14, %c0_15] : memref<16x128xf32, #tpu.memory_space<vmem>>, vector<16x128xf32>
      tpu.vector_store %arg6[%c0_14, %c0_15], %15 {strides = array<i32>} : memref<16x128xf32, #tpu.memory_space<vmem>>, vector<16x128xf32>,
    } else {
    }
    return
  }
  func.func @transform_0(%arg0: i32, %arg1: i32, %arg2: i32) -> (i32, i32) {
    %c0_i32 = arith.constant 0 : i32
    return %arg0, %arg2 : i32, i32
  }
  func.func @transform_1(%arg0: i32, %arg1: i32, %arg2: i32) -> (i32, i32) {
    %c0_i32 = arith.constant 0 : i32
    return %arg2, %arg1 : i32, i32
  }
  func.func @transform_2(%arg0: i32, %arg1: i32, %arg2: i32) -> (i32, i32) {
    %c0_i32 = arith.constant 0 : i32
    %c0_i32_0 = arith.constant 0 : i32
    return %c0_i32, %arg1 : i32, i32
  }
  func.func @transform_3(%arg0: i32, %arg1: i32, %arg2: i32) -> (i32, i32) {
    %c0_i32 = arith.constant 0 : i32
    return %arg0, %arg1 : i32, i32
  }
}

</mosaic_0001>

<llo_original>
// kernel: tpu_custom_call.1
$region0: #{tpu_custom_call.1}
  #allocation0 [shape = 'u32[]', space=smem, size = 0x4, offset = 0x4, fixed_abs, tag = 'smem constant byte address 0x4 - core index']
  #allocation1 [shape = 'u32[72,128]{1,0:T(1,128)}', space=vmem, size = 0x9000, scoped, tag = 'internal scratch']
  #allocation2 [shape = 'f32[16,128]{1,0:T(8,128)}', space=vmem, size = 0x2000, scoped, tag = 'scratch operand']
  %s0 = inlined_call_operand.hbm [shape: bf16[16,768], index: 0, kind: input, shape index: {}]
  %s1 = inlined_call_operand.hbm [shape: bf16[768,128], index: 1, kind: input, shape index: {}]
  %s2 = inlined_call_operand.vmem [shape: f32[1,128], index: 2, kind: input, shape index: {}]
  %s3 = inlined_call_operand.hbm [shape: f32[16,128], index: 3, kind: output, shape index: {}]
  %s4 = sld [smem:[#allocation0]]
  $region38: #{tpu_custom_call.1} parent=0
    _
  %s6 = ssub.s32 1, %s4
  %s7 = scalar_select 0, %s6, %s4
  $region1: #{tpu_custom_call.1} parent=0
    #allocation3 [shape = 'u8[24576]{0}', space=vmem, size = 0x6000, scoped, tag = 'input window, operand 0, single buffered']
    #allocation4 [shape = 's32[1]{0}', space=sflag, size = 0x4, scoped, tag = 'scoped memory for tpu_custom_call.1']
    #allocation5 [shape = 's32[1]{0}', space=sflag, size = 0x4, scoped, tag = 'scoped memory for tpu_custom_call.1']
    #allocation6 [shape = 'u8[196608]{0}', space=vmem, size = 0x30000, scoped, tag = 'input window, operand 1, single buffered']
    #allocation7 [shape = 's32[1]{0}', space=sflag, size = 0x4, scoped, tag = 'scoped memory for tpu_custom_call.1']
    #allocation8 [shape = 'u8[8192]{0}', space=vmem, size = 0x2000, scoped, tag = 'output window, operand 0, single buffered']
    %8 = vsyncpa [#allocation4], 0
    %9 = vsyncpa [#allocation7], 0
    %10 = vsyncpa [#allocation5], 0
    // Predicated region
    $region2: #{tpu_custom_call.1} parent=1 // pred_check
      _
    $region3: #{tpu_custom_call.1} parent=1 // pred_check_branch
      %12 = sbr.rel (0) target = $region5
    $region4: #{tpu_custom_call.1} parent=1 // pred_region
      %14 = vsyncadd [#allocation4], 0
      %s15 = sshll.u32 %s0, 4
      %s16 = int_to_ptr.hbm [resolvable:$true] %s15
      %s17 = sshll.u32 [#allocation3], 4
      %s18 = int_to_ptr.vmem [resolvable:$true] %s17
      %23 = dma.hbm_to_vmem [thread:$0]  %s16, 768, %s18, [#allocation4], 384, 384, 24
    $region5: #{tpu_custom_call.1} parent=1 // pred_fallthru
      _
    // Predicated region
    $region6: #{tpu_custom_call.1} parent=1 // pred_check
      _
    $region7: #{tpu_custom_call.1} parent=1 // pred_check_branch
      %25 = sbr.rel (0) target = $region9
    $region8: #{tpu_custom_call.1} parent=1 // pred_region
      %27 = vsyncadd [#allocation7], 0
      %s28 = sshll.u32 %s1, 4
      %s29 = int_to_ptr.hbm [resolvable:$true] %s28
      %s30 = sshll.u32 [#allocation6], 4
      %s31 = int_to_ptr.vmem [resolvable:$true] %s30
      %36 = dma.hbm_to_vmem [thread:$0]  %s29, 6144, %s31, [#allocation7], 64, 64, 4
    $region9: #{tpu_custom_call.1} parent=1 // pred_fallthru
      _
    // Predicated region
    $region10: #{tpu_custom_call.1} parent=1 // pred_check
      _
    $region11: #{tpu_custom_call.1} parent=1 // pred_check_branch
      %38 = sbr.rel (0) target = $region13
    $region12: #{tpu_custom_call.1} parent=1 // pred_region
      _
    $region13: #{tpu_custom_call.1} parent=1 // pred_fallthru
      _
    // Predicated region
    $region14: #{tpu_custom_call.1} parent=1 // pred_check
      _
    $region15: #{tpu_custom_call.1} parent=1 // pred_check_branch
      %40 = sbr.rel (0) target = $region17
    $region16: #{tpu_custom_call.1} parent=1 // pred_region
      %42 = dma.done [#allocation4], 768
    $region17: #{tpu_custom_call.1} parent=1 // pred_fallthru
      _
    // Predicated region
    $region18: #{tpu_custom_call.1} parent=1 // pred_check
      _
    $region19: #{tpu_custom_call.1} parent=1 // pred_check_branch
      %44 = sbr.rel (0) target = $region21
    $region20: #{tpu_custom_call.1} parent=1 // pred_region
      %46 = dma.done [#allocation7], 6144
    $region21: #{tpu_custom_call.1} parent=1 // pred_fallthru
      _
    %p47 = scmp.eq.s32.totalorder 0, 0
    // Predicated region
    $region22: #{tpu_custom_call.1} parent=1 // pred_check
      %p48 = pneg %p47
    $region23: #{tpu_custom_call.1} parent=1 // pred_check_branch
      %50 = sbr.rel (%p48) target = $region25
    $region24: #{tpu_custom_call.1} parent=1 // pred_region
      %51 = vst [vmem:[#allocation2] sm:$0xff] 0.0
      %52 = vst [vmem:[#allocation2 + $0x8] sm:$0xff] 0.0
    $region25: #{tpu_custom_call.1} parent=1 // pred_fallthru
      _
    %v53 = vld [vmem:[#allocation2] sm:$0xff]
    %v54 = vld [vmem:[#allocation2 + $0x8] sm:$0xff]
    %v55 = vld [vmem:[#allocation3] sm:$0xff]
    %v56 = vld [vmem:[#allocation3 + $0x8] sm:$0xff]
    %v57 = vld [vmem:[#allocation3 + $0x10] sm:$0xff]
    %v58 = vld [vmem:[#allocation3 + $0x18] sm:$0xff]
    %v59 = vld [vmem:[#allocation3 + $0x20] sm:$0xff]
    %v60 = vld [vmem:[#allocation3 + $0x28] sm:$0xff]
    %v61 = vld [vmem:[#allocation6] sm:$0xf]
    %v62 = vld [vmem:[#allocation6 + $0x4] sm:$0xf]
    %v63 = vld [vmem:[#allocation6 + $0x8] sm:$0xf]
    %v64 = vld [vmem:[#allocation6 + $0xc] sm:$0xf]
    %v65 = vld [vmem:[#allocation6 + $0x10] sm:$0xf]
    %v66 = vld [vmem:[#allocation6 + $0x14] sm:$0xf]
    %v67 = vld [vmem:[#allocation6 + $0x18] sm:$0xf]
    %v68 = vld [vmem:[#allocation6 + $0x1c] sm:$0xf]
    %v69 = vld [vmem:[#allocation6 + $0x20] sm:$0xf]
    %v70 = vld [vmem:[#allocation6 + $0x24] sm:$0xf]
    %v71 = vld [vmem:[#allocation6 + $0x28] sm:$0xf]
    %v72 = vld [vmem:[#allocation6 + $0x2c] sm:$0xf]
    %v73 = vld [vmem:[#allocation6 + $0x30] sm:$0xf]
    %v74 = vld [vmem:[#allocation6 + $0x34] sm:$0xf]
    %v75 = vld [vmem:[#allocation6 + $0x38] sm:$0xf]
    %v76 = vld [vmem:[#allocation6 + $0x3c] sm:$0xf]
    %v77 = vld [vmem:[#allocation6 + $0x40] sm:$0xf]
    %v78 = vld [vmem:[#allocation6 + $0x44] sm:$0xf]
    %v79 = vld [vmem:[#allocation6 + $0x48] sm:$0xf]
    %v80 = vld [vmem:[#allocation6 + $0x4c] sm:$0xf]
    %v81 = vld [vmem:[#allocation6 + $0x50] sm:$0xf]
    %v82 = vld [vmem:[#allocation6 + $0x54] sm:$0xf]
    %v83 = vld [vmem:[#allocation6 + $0x58] sm:$0xf]
    %v84 = vld [vmem:[#allocation6 + $0x5c] sm:$0xf]
    %v85 = vld [vmem:[#allocation6 + $0x60] sm:$0xf]
    %v86 = vld [vmem:[#allocation6 + $0x64] sm:$0xf]
    %v87 = vld [vmem:[#allocation6 + $0x68] sm:$0xf]
    %v88 = vld [vmem:[#allocation6 + $0x6c] sm:$0xf]
    %v89 = vld [vmem:[#allocation6 + $0x70] sm:$0xf]
    %v90 = vld [vmem:[#allocation6 + $0x74] sm:$0xf]
    %v91 = vld [vmem:[#allocation6 + $0x78] sm:$0xf]
    %v92 = vld [vmem:[#allocation6 + $0x7c] sm:$0xf]
    %v93 = vld [vmem:[#allocation6 + $0x80] sm:$0xf]
    %v94 = vld [vmem:[#allocation6 + $0x84] sm:$0xf]
    %v95 = vld [vmem:[#allocation6 + $0x88] sm:$0xf]
    %v96 = vld [vmem:[#allocation6 + $0x8c] sm:$0xf]
    %v97 = vld [vmem:[#allocation6 + $0x90] sm:$0xf]
    %v98 = vld [vmem:[#allocation6 + $0x94] sm:$0xf]
    %v99 = vld [vmem:[#allocation6 + $0x98] sm:$0xf]
    %v100 = vld [vmem:[#allocation6 + $0x9c] sm:$0xf]
    %v101 = vld [vmem:[#allocation6 + $0xa0] sm:$0xf]
    %v102 = vld [vmem:[#allocation6 + $0xa4] sm:$0xf]
    %v103 = vld [vmem:[#allocation6 + $0xa8] sm:$0xf]
    %v104 = vld [vmem:[#allocation6 + $0xac] sm:$0xf]
    %v105 = vld [vmem:[#allocation6 + $0xb0] sm:$0xf]
    %v106 = vld [vmem:[#allocation6 + $0xb4] sm:$0xf]
    %v107 = vld [vmem:[#allocation6 + $0xb8] sm:$0xf]
    %v108 = vld [vmem:[#allocation6 + $0xbc] sm:$0xf]
    %v109 = vld [vmem:[#allocation6 + $0xc0] sm:$0xf]
    %v110 = vld [vmem:[#allocation6 + $0xc4] sm:$0xf]
    %v111 = vld [vmem:[#allocation6 + $0xc8] sm:$0xf]
    %v112 = vld [vmem:[#allocation6 + $0xcc] sm:$0xf]
    %v113 = vld [vmem:[#allocation6 + $0xd0] sm:$0xf]
    %v114 = vld [vmem:[#allocation6 + $0xd4] sm:$0xf]
    %v115 = vld [vmem:[#allocation6 + $0xd8] sm:$0xf]
    %v116 = vld [vmem:[#allocation6 + $0xdc] sm:$0xf]
    %v117 = vld [vmem:[#allocation6 + $0xe0] sm:$0xf]
    %v118 = vld [vmem:[#allocation6 + $0xe4] sm:$0xf]
    %v119 = vld [vmem:[#allocation6 + $0xe8] sm:$0xf]
    %v120 = vld [vmem:[#allocation6 + $0xec] sm:$0xf]
    %v121 = vld [vmem:[#allocation6 + $0xf0] sm:$0xf]
    %v122 = vld [vmem:[#allocation6 + $0xf4] sm:$0xf]
    %v123 = vld [vmem:[#allocation6 + $0xf8] sm:$0xf]
    %v124 = vld [vmem:[#allocation6 + $0xfc] sm:$0xf]
    %v125 = vld [vmem:[#allocation6 + $0x100] sm:$0xf]
    %v126 = vld [vmem:[#allocation6 + $0x104] sm:$0xf]
    %v127 = vld [vmem:[#allocation6 + $0x108] sm:$0xf]
    %v128 = vld [vmem:[#allocation6 + $0x10c] sm:$0xf]
    %v129 = vld [vmem:[#allocation6 + $0x110] sm:$0xf]
    %v130 = vld [vmem:[#allocation6 + $0x114] sm:$0xf]
    %v131 = vld [vmem:[#allocation6 + $0x118] sm:$0xf]
    %v132 = vld [vmem:[#allocation6 + $0x11c] sm:$0xf]
    %v133 = vld [vmem:[#allocation6 + $0x120] sm:$0xf]
    %v134 = vld [vmem:[#allocation6 + $0x124] sm:$0xf]
    %v135 = vld [vmem:[#allocation6 + $0x128] sm:$0xf]
    %v136 = vld [vmem:[#allocation6 + $0x12c] sm:$0xf]
    %v137 = vld [vmem:[#allocation6 + $0x130] sm:$0xf]
    %v138 = vld [vmem:[#allocation6 + $0x134] sm:$0xf]
    %v139 = vld [vmem:[#allocation6 + $0x138] sm:$0xf]
    %v140 = vld [vmem:[#allocation6 + $0x13c] sm:$0xf]
    %v141 = vld [vmem:[#allocation6 + $0x140] sm:$0xf]
    %v142 = vld [vmem:[#allocation6 + $0x144] sm:$0xf]
    %v143 = vld [vmem:[#allocation6 + $0x148] sm:$0xf]
    %v144 = vld [vmem:[#allocation6 + $0x14c] sm:$0xf]
    %v145 = vld [vmem:[#allocation6 + $0x150] sm:$0xf]
    %v146 = vld [vmem:[#allocation6 + $0x154] sm:$0xf]
    %v147 = vld [vmem:[#allocation6 + $0x158] sm:$0xf]
    %v148 = vld [vmem:[#allocation6 + $0x15c] sm:$0xf]
    %v149 = vld [vmem:[#allocation6 + $0x160] sm:$0xf]
    %v150 = vld [vmem:[#allocation6 + $0x164] sm:$0xf]
    %v151 = vld [vmem:[#allocation6 + $0x168] sm:$0xf]
    %v152 = vld [vmem:[#allocation6 + $0x16c] sm:$0xf]
    %v153 = vld [vmem:[#allocation6 + $0x170] sm:$0xf]
    %v154 = vld [vmem:[#allocation6 + $0x174] sm:$0xf]
    %v155 = vld [vmem:[#allocation6 + $0x178] sm:$0xf]
    %v156 = vld [vmem:[#allocation6 + $0x17c] sm:$0xf]
    %v163 = vunpack.c.l.b16 %v55
    %v164 = vunpack.c.h.b16 %v55
    %v165 = vunpack.c.l.b16 %v56
    %v166 = vunpack.c.h.b16 %v56
    %v167 = vunpack.c.l.b16 %v57
    %v168 = vunpack.c.h.b16 %v57
    %v169 = vunpack.c.l.b16 %v58
    %v170 = vunpack.c.h.b16 %v58
    %v171 = vunpack.c.l.b16 %v59
    %v172 = vunpack.c.h.b16 %v59
    %v173 = vunpack.c.l.b16 %v60
    %v174 = vunpack.c.h.b16 %v60
    %v175 = vpack.c.b16 %v169, %v163
    %v176 = vpack.c.b16 %v170, %v164
    %v177 = vpack.c.b16 %v171, %v165
    %v178 = vpack.c.b16 %v172, %v166
    %v179 = vpack.c.b16 %v173, %v167
    %v180 = vpack.c.b16 %v174, %v168
    %v283 = vunpack.c.l.b16 %v61
    %v284 = vunpack.c.l.b16 %v62
    %v285 = vunpack.c.l.b16 %v63
    %v286 = vunpack.c.l.b16 %v64
    %v287 = vunpack.c.l.b16 %v65
    %v288 = vunpack.c.l.b16 %v66
    %v289 = vunpack.c.l.b16 %v67
    %v290 = vunpack.c.l.b16 %v68
    %v291 = vunpack.c.l.b16 %v69
    %v292 = vunpack.c.l.b16 %v70
    %v293 = vunpack.c.l.b16 %v71
    %v294 = vunpack.c.l.b16 %v72
    %v295 = vunpack.c.l.b16 %v73
    %v296 = vunpack.c.l.b16 %v74
    %v297 = vunpack.c.l.b16 %v75
    %v298 = vunpack.c.l.b16 %v76
    %v299 = vunpack.c.l.b16 %v77
    %v300 = vunpack.c.l.b16 %v78
    %v301 = vunpack.c.l.b16 %v79
    %v302 = vunpack.c.l.b16 %v80
    %v303 = vunpack.c.l.b16 %v81
    %v304 = vunpack.c.l.b16 %v82
    %v305 = vunpack.c.l.b16 %v83
    %v306 = vunpack.c.l.b16 %v84
    %v307 = vunpack.c.l.b16 %v85
    %v308 = vunpack.c.l.b16 %v86
    %v309 = vunpack.c.l.b16 %v87
    %v310 = vunpack.c.l.b16 %v88
    %v311 = vunpack.c.l.b16 %v89
    %v312 = vunpack.c.l.b16 %v90
    %v313 = vunpack.c.l.b16 %v91
    %v314 = vunpack.c.l.b16 %v92
    %v315 = vunpack.c.l.b16 %v93
    %v316 = vunpack.c.l.b16 %v94
    %v317 = vunpack.c.l.b16 %v95
    %v318 = vunpack.c.l.b16 %v96
    %v319 = vunpack.c.l.b16 %v97
    %v320 = vunpack.c.l.b16 %v98
    %v321 = vunpack.c.l.b16 %v99
    %v322 = vunpack.c.l.b16 %v100
    %v323 = vunpack.c.l.b16 %v101
    %v324 = vunpack.c.l.b16 %v102
    %v325 = vunpack.c.l.b16 %v103
    %v326 = vunpack.c.l.b16 %v104
    %v327 = vunpack.c.l.b16 %v105
    %v328 = vunpack.c.l.b16 %v106
    %v329 = vunpack.c.l.b16 %v107
    %v330 = vunpack.c.l.b16 %v108
    %v331 = vunpack.c.l.b16 %v109
    %v332 = vunpack.c.l.b16 %v110
    %v333 = vunpack.c.l.b16 %v111
    %v334 = vunpack.c.l.b16 %v112
    %v335 = vunpack.c.l.b16 %v113
    %v336 = vunpack.c.l.b16 %v114
    %v337 = vunpack.c.l.b16 %v115
    %v338 = vunpack.c.l.b16 %v116
    %v339 = vunpack.c.l.b16 %v117
    %v340 = vunpack.c.l.b16 %v118
    %v341 = vunpack.c.l.b16 %v119
    %v342 = vunpack.c.l.b16 %v120
    %v343 = vunpack.c.l.b16 %v121
    %v344 = vunpack.c.l.b16 %v122
    %v345 = vunpack.c.l.b16 %v123
    %v346 = vunpack.c.l.b16 %v124
    %v347 = vunpack.c.l.b16 %v125
    %v348 = vunpack.c.l.b16 %v126
    %v349 = vunpack.c.l.b16 %v127
    %v350 = vunpack.c.l.b16 %v128
    %v351 = vunpack.c.l.b16 %v129
    %v352 = vunpack.c.l.b16 %v130
    %v353 = vunpack.c.l.b16 %v131
    %v354 = vunpack.c.l.b16 %v132
    %v355 = vunpack.c.l.b16 %v133
    %v356 = vunpack.c.l.b16 %v134
    %v357 = vunpack.c.l.b16 %v135
    %v358 = vunpack.c.l.b16 %v136
    %v359 = vunpack.c.l.b16 %v137
    %v360 = vunpack.c.l.b16 %v138
    %v361 = vunpack.c.l.b16 %v139
    %v362 = vunpack.c.l.b16 %v140
    %v363 = vunpack.c.l.b16 %v141
    %v364 = vunpack.c.l.b16 %v142
    %v365 = vunpack.c.l.b16 %v143
    %v366 = vunpack.c.l.b16 %v144
    %v367 = vunpack.c.l.b16 %v145
    %v368 = vunpack.c.l.b16 %v146
    %v369 = vunpack.c.l.b16 %v147
    %v370 = vunpack.c.l.b16 %v148
    %v371 = vunpack.c.l.b16 %v149
    %v372 = vunpack.c.l.b16 %v150
    %v373 = vunpack.c.l.b16 %v151
    %v374 = vunpack.c.l.b16 %v152
    %v375 = vunpack.c.l.b16 %v153
    %v376 = vunpack.c.l.b16 %v154
    %v377 = vunpack.c.l.b16 %v155
    %v378 = vunpack.c.l.b16 %v156
    %v379 = vpack.c.b16 %v284, %v283
    %v380 = vpack.c.b16 %v286, %v285
    %v381 = vpack.c.b16 %v288, %v287
    %v382 = vpack.c.b16 %v290, %v289
    %v383 = vpack.c.b16 %v292, %v291
    %v384 = vpack.c.b16 %v294, %v293
    %v385 = vpack.c.b16 %v296, %v295
    %v386 = vpack.c.b16 %v298, %v297
    %v387 = vpack.c.b16 %v300, %v299
    %v388 = vpack.c.b16 %v302, %v301
    %v389 = vpack.c.b16 %v304, %v303
    %v390 = vpack.c.b16 %v306, %v305
    %v391 = vpack.c.b16 %v308, %v307
    %v392 = vpack.c.b16 %v310, %v309
    %v393 = vpack.c.b16 %v312, %v311
    %v394 = vpack.c.b16 %v314, %v313
    %v395 = vpack.c.b16 %v316, %v315
    %v396 = vpack.c.b16 %v318, %v317
    %v397 = vpack.c.b16 %v320, %v319
    %v398 = vpack.c.b16 %v322, %v321
    %v399 = vpack.c.b16 %v324, %v323
    %v400 = vpack.c.b16 %v326, %v325
    %v401 = vpack.c.b16 %v328, %v327
    %v402 = vpack.c.b16 %v330, %v329
    %v403 = vpack.c.b16 %v332, %v331
    %v404 = vpack.c.b16 %v334, %v333
    %v405 = vpack.c.b16 %v336, %v335
    %v406 = vpack.c.b16 %v338, %v337
    %v407 = vpack.c.b16 %v340, %v339
    %v408 = vpack.c.b16 %v342, %v341
    %v409 = vpack.c.b16 %v344, %v343
    %v410 = vpack.c.b16 %v346, %v345
    %v411 = vpack.c.b16 %v348, %v347
    %v412 = vpack.c.b16 %v350, %v349
    %v413 = vpack.c.b16 %v352, %v351
    %v414 = vpack.c.b16 %v354, %v353
    %v415 = vpack.c.b16 %v356, %v355
    %v416 = vpack.c.b16 %v358, %v357
    %v417 = vpack.c.b16 %v360, %v359
    %v418 = vpack.c.b16 %v362, %v361
    %v419 = vpack.c.b16 %v364, %v363
    %v420 = vpack.c.b16 %v366, %v365
    %v421 = vpack.c.b16 %v368, %v367
    %v422 = vpack.c.b16 %v370, %v369
    %v423 = vpack.c.b16 %v372, %v371
    %v424 = vpack.c.b16 %v374, %v373
    %v425 = vpack.c.b16 %v376, %v375
    %v426 = vpack.c.b16 %v378, %v377
    %475 = vmatpush.bf16.msra.mxu0 %v386
    %476 = vmatpush.bf16.msra.mxu0 %v385
    %477 = vmatpush.bf16.msra.mxu0 %v384
    %478 = vmatpush.bf16.msra.mxu0 %v383
    %479 = vmatpush.bf16.msra.mxu0 %v382
    %480 = vmatpush.bf16.msra.mxu0 %v381
    %481 = vmatpush.bf16.msra.mxu0 %v380
    %482 = vmatpush.bf16.msra.mxu0 %v379
    %483 = vmatmul.bf16.gmra.mxu0 %v175
    %v484 = vpop.f32.mrf.mxu0
    %v485 = vadd.f32 0.0, %v484
    %v486 = vpop.f32.mrf.mxu0
    %v487 = vadd.f32 0.0, %v486
    %488 = vdwg.mxu0
    %489 = vmatpush.bf16.msra.mxu0 %v394
    %490 = vmatpush.bf16.msra.mxu0 %v393
    %491 = vmatpush.bf16.msra.mxu0 %v392
    %492 = vmatpush.bf16.msra.mxu0 %v391
    %493 = vmatpush.bf16.msra.mxu0 %v390
    %494 = vmatpush.bf16.msra.mxu0 %v389
    %495 = vmatpush.bf16.msra.mxu0 %v388
    %496 = vmatpush.bf16.msra.mxu0 %v387
    %497 = vmatmul.bf16.gmra.mxu0 %v176
    %v498 = vpop.f32.mrf.mxu0
    %v499 = vadd.f32 %v485, %v498
    %v500 = vpop.f32.mrf.mxu0
    %v501 = vadd.f32 %v487, %v500
    %502 = vdwg.mxu0
    %503 = vmatpush.bf16.msra.mxu0 %v402
    %504 = vmatpush.bf16.msra.mxu0 %v401
    %505 = vmatpush.bf16.msra.mxu0 %v400
    %506 = vmatpush.bf16.msra.mxu0 %v399
    %507 = vmatpush.bf16.msra.mxu0 %v398
    %508 = vmatpush.bf16.msra.mxu0 %v397
    %509 = vmatpush.bf16.msra.mxu0 %v396
    %510 = vmatpush.bf16.msra.mxu0 %v395
    %511 = vmatmul.bf16.gmra.mxu0 %v177
    %v512 = vpop.f32.mrf.mxu0
    %v513 = vadd.f32 %v499, %v512
    %v514 = vpop.f32.mrf.mxu0
    %v515 = vadd.f32 %v501, %v514
    %516 = vdwg.mxu0
    %517 = vmatpush.bf16.msra.mxu0 %v410
    %518 = vmatpush.bf16.msra.mxu0 %v409
    %519 = vmatpush.bf16.msra.mxu0 %v408
    %520 = vmatpush.bf16.msra.mxu0 %v407
    %521 = vmatpush.bf16.msra.mxu0 %v406
    %522 = vmatpush.bf16.msra.mxu0 %v405
    %523 = vmatpush.bf16.msra.mxu0 %v404
    %524 = vmatpush.bf16.msra.mxu0 %v403
    %525 = vmatmul.bf16.gmra.mxu0 %v178
    %v526 = vpop.f32.mrf.mxu0
    %v527 = vadd.f32 %v513, %v526
    %v528 = vpop.f32.mrf.mxu0
    %v529 = vadd.f32 %v515, %v528
    %530 = vdwg.mxu0
    %531 = vmatpush.bf16.msra.mxu0 %v418
    %532 = vmatpush.bf16.msra.mxu0 %v417
    %533 = vmatpush.bf16.msra.mxu0 %v416
    %534 = vmatpush.bf16.msra.mxu0 %v415
    %535 = vmatpush.bf16.msra.mxu0 %v414
    %536 = vmatpush.bf16.msra.mxu0 %v413
    %537 = vmatpush.bf16.msra.mxu0 %v412
    %538 = vmatpush.bf16.msra.mxu0 %v411
    %539 = vmatmul.bf16.gmra.mxu0 %v179
    %v540 = vpop.f32.mrf.mxu0
    %v541 = vadd.f32 %v527, %v540
    %v542 = vpop.f32.mrf.mxu0
    %v543 = vadd.f32 %v529, %v542
    %544 = vdwg.mxu0
    %545 = vmatpush.bf16.msra.mxu0 %v426
    %546 = vmatpush.bf16.msra.mxu0 %v425
    %547 = vmatpush.bf16.msra.mxu0 %v424
    %548 = vmatpush.bf16.msra.mxu0 %v423
    %549 = vmatpush.bf16.msra.mxu0 %v422
    %550 = vmatpush.bf16.msra.mxu0 %v421
    %551 = vmatpush.bf16.msra.mxu0 %v420
    %552 = vmatpush.bf16.msra.mxu0 %v419
    %553 = vmatmul.bf16.gmra.mxu0 %v180
    %v554 = vpop.f32.mrf.mxu0
    %v555 = vadd.f32 %v541, %v554
    %v556 = vpop.f32.mrf.mxu0
    %v557 = vadd.f32 %v543, %v556
    %558 = vdwg.mxu0
    %v559 = vadd.f32 %v53, %v555
    %v560 = vadd.f32 %v54, %v557
    %561 = vst [vmem:[#allocation2] sm:$0xff] %v559
    %562 = vst [vmem:[#allocation2 + $0x8] sm:$0xff] %v560
    // Predicated region
    $region26: #{tpu_custom_call.1} parent=1 // pred_check
      %p563 = pneg %p47
    $region27: #{tpu_custom_call.1} parent=1 // pred_check_branch
      %565 = sbr.rel (%p563) target = $region29
    $region28: #{tpu_custom_call.1} parent=1 // pred_region
      %v566 = vld [vmem:[#allocation2] sm:$0xff]
      %v567 = vld [vmem:[#allocation2 + $0x8] sm:$0xff]
      %v568 = vld [vmem:[%s2] sm:$0x1]
      %v570 = vperm.slane %v568, 0
      %v572 = vadd.f32 %v566, %v570
      %v573 = vadd.f32 %v567, %v570
      %574 = vst [vmem:[#allocation8] sm:$0xff] %v572
      %575 = vst [vmem:[#allocation8 + $0x8] sm:$0xff] %v573
    $region29: #{tpu_custom_call.1} parent=1 // pred_fallthru
      _
    // Predicated region
    $region30: #{tpu_custom_call.1} parent=1 // pred_check
      _
    $region31: #{tpu_custom_call.1} parent=1 // pred_check_branch
      %577 = sbr.rel (0) target = $region33
    $region32: #{tpu_custom_call.1} parent=1 // pred_region
      %579 = vsyncadd [#allocation5], 0
      %s580 = sshll.u32 [#allocation8], 4
      %s581 = int_to_ptr.vmem [resolvable:$true] %s580
      %s582 = sshll.u32 %s3, 4
      %s583 = int_to_ptr.hbm [resolvable:$true] %s582
      %588 = dma.vmem_to_hbm [thread:$0]  %s581, 256, %s583, [#allocation5], 128, 128, 8
    $region33: #{tpu_custom_call.1} parent=1 // pred_fallthru
      _
    // Predicated region
    $region34: #{tpu_custom_call.1} parent=1 // pred_check
      _
    $region35: #{tpu_custom_call.1} parent=1 // pred_check_branch
      %590 = sbr.rel (0) target = $region37
    $region36: #{tpu_custom_call.1} parent=1 // pred_region
      %592 = dma.done [#allocation5], 256
    $region37: #{tpu_custom_call.1} parent=1 // pred_fallthru
      _
    %593 = vsyncpa [#allocation4], 1
    %594 = vsyncpa [#allocation7], 1
    %595 = vsyncpa [#allocation5], 1

</llo_original>
